<compile_context>
chip_gen: v5e
topology: v5e:2x2
jax: 0.10.0
libtpu: 0.0.40
codegen_flags: <defaults>
</compile_context>

<pallas_src>
import functools

import jax
import jax.numpy as jnp
from jax.experimental import pallas as pl
from jax.experimental.pallas import tpu as pltpu

_LANE = 128
_SUBLANE = 8


def _round_up(x, m):
    return ((x + m - 1) // m) * m


@functools.lru_cache(maxsize=1)
def _chip_vmem_and_tile_cap():
    """Returns (vmem_capacity_bytes, max_row_tile) for the local chip."""
    try:
        cap = int(pltpu.get_tpu_info().vmem_capacity_bytes)
        if cap <= 0:
            raise ValueError("bad vmem capacity")
    except Exception:
        # Unknown chip: assume the smallest VMEM (v7x: 64 MiB) and the
        # v5e/v6e plateau tile cap -- safe everywhere.
        return 64 * 1024 * 1024, 2048
    # v7x: 64 MiB VMEM but ~3.2 TB/s HBM -> bigger tiles amortize the ~0.35us
    # per-grid-step cost.  v5e/v6e (128 MiB VMEM) are already at the ~85%
    # HBM-roofline plateau around 1-2K rows, so keep 2048.
    max_tile = 4096 if cap <= 64 * 1024 * 1024 else 2048
    return cap, max_tile


def _weighted_sum_kernel(w_ref, *refs):
    # w_ref:      (R, 1, Fk) f32 VMEM (pre-cast in the wrapper; broadcast over rows)
    # refs[:-1]:  R feature refs, each (rows, Fk) VMEM
    # refs[-1]:   (rows, Fk) output VMEM
    *feat_refs, o_ref = refs
    acc = feat_refs[0][...].astype(jnp.float32) * w_ref[0]
    for r in range(1, len(feat_refs)):
        acc = acc + feat_refs[r][...].astype(jnp.float32) * w_ref[r]
    # Single fused expression -> one final store per output vreg.
    o_ref[...] = acc.astype(o_ref.dtype)


def _pick_row_tile(n_rows, n_res, feat_dim, in_itemsize, out_itemsize,
                   vmem_cap, max_row_tile):
    # Double-buffered inputs + output per row of tile, plus ~2 f32 temp slabs
    # of slack for the accumulator chain.
    per_row = 2 * feat_dim * (n_res * in_itemsize + out_itemsize) + 2 * feat_dim * 4
    usable = int(vmem_cap * 0.7)
    row_tile = max(usable // max(per_row, 1), _SUBLANE)
    row_tile = min(row_tile, max_row_tile)
    row_tile = max((row_tile // _SUBLANE) * _SUBLANE, _SUBLANE)

    if row_tile >= n_rows:
        if n_rows >= 4 * 256:
            # Whole problem fits in one step: split into ~4 steps so a 2-TC
            # part (v7x) shards the row grid across both cores AND each core
            # still has >=2 steps to double-buffer.  Only when each step stays
            # >=256 rows, so the extra ~1us of step overhead is negligible on
            # 1-TC chips (v5e/v6e).
            row_tile = _round_up(pl.cdiv(n_rows, 4), _SUBLANE)
        else:
            # Single block covering the full row extent (block dim == array dim
            # is always a legal TPU block shape, no OOB anywhere).
            row_tile = n_rows
    return row_tile


def _vmem_limit_bytes(row_tile, n_res, feat_dim, in_itemsize, out_itemsize, vmem_cap):
    tile_bytes = 2 * row_tile * feat_dim * (n_res * in_itemsize + out_itemsize)
    temp_bytes = 2 * row_tile * feat_dim * 4                 # f32 acc-chain slack
    w_bytes = n_res * _SUBLANE * feat_dim * 4                # weights (sublane-padded)
    limit = tile_bytes + temp_bytes + w_bytes + (4 << 20)    # headroom
    limit = max(limit, 16 << 20)
    return int(min(limit, int(vmem_cap * 0.9)))


def _weighted_sum_2d(feat_arrays, weights_f32):
    """feat_arrays: R arrays of (N, Fk); weights_f32: (R, 1, Fk) f32 -> (N, Fk)."""
    n_res = len(feat_arrays)
    n_rows, feat_dim = feat_arrays[0].shape
    dtype = feat_arrays[0].dtype
    in_sz = jnp.dtype(dtype).itemsize
    out_sz = in_sz

    vmem_cap, max_row_tile = _chip_vmem_and_tile_cap()
    row_tile = _pick_row_tile(n_rows, n_res, feat_dim, in_sz, out_sz,
                              vmem_cap, max_row_tile)
    grid = (pl.cdiv(n_rows, row_tile),)   # ragged last block handled by Pallas

    feat_spec = pl.BlockSpec((row_tile, feat_dim), lambda i: (i, 0))
    w_spec = pl.BlockSpec((n_res, 1, feat_dim), lambda i: (0, 0, 0))

    cost = pl.CostEstimate(
        flops=2 * n_res * n_rows * feat_dim,
        transcendentals=0,
        bytes_accessed=(n_res * in_sz + out_sz) * n_rows * feat_dim
                       + n_res * feat_dim * 4,
    )

    return pl.pallas_call(
        _weighted_sum_kernel,
        out_shape=jax.ShapeDtypeStruct((n_rows, feat_dim), dtype),
        grid_spec=pltpu.PrefetchScalarGridSpec(
            num_scalar_prefetch=0,
            grid=grid,
            in_specs=[w_spec] + [feat_spec] * n_res,
            out_specs=pl.BlockSpec((row_tile, feat_dim), lambda i: (i, 0)),
        ),
        compiler_params=pltpu.CompilerParams(
            dimension_semantics=("parallel",),
            vmem_limit_bytes=_vmem_limit_bytes(
                row_tile, n_res, feat_dim, in_sz, out_sz, vmem_cap),
        ),
        cost_estimate=cost,
    )(weights_f32, *feat_arrays)


@jax.jit
def linear_weighted_sum(feats, weights):
    """feats: sequence of R arrays, each (..., F); weights: (R, 1, F) or list of (1, F)."""
    feats = list(feats)
    n_res = len(feats)
    orig_shape = feats[0].shape
    in_features = orig_shape[-1]
    n_rows = 1
    for d in orig_shape[:-1]:
        n_rows *= d

    if isinstance(weights, (list, tuple)):
        w = jnp.stack([jnp.reshape(wi, (1, in_features)) for wi in weights], axis=0)
    else:
        w = jnp.reshape(weights, (n_res, 1, in_features))
    w = w.astype(jnp.float32)  # pre-cast: kernel inner loop is pure mul-add

    feats2d = [f.reshape(n_rows, in_features) for f in feats]  # free reshapes

    if in_features % _LANE == 0:
        out = _weighted_sum_2d(feats2d, w)
    elif _LANE % in_features == 0 and n_rows % (_LANE // in_features) == 0:
        # Lane-dense fold: pack `fold` rows into one 128-wide lane row so output
        # stores are full vst (not masked vst.msk).  Pure reshape, no pad/copy.
        fold = _LANE // in_features
        feats_fold = [f.reshape(n_rows // fold, _LANE) for f in feats2d]
        w_fold = jnp.tile(w, (1, 1, fold))            # (R, 1, 128), tiny
        out = _weighted_sum_2d(feats_fold, w_fold).reshape(n_rows, in_features)
    else:
        # TODO(synk): generalize lane-dense repack to arbitrary F via a
        # lcm(F,128)-period weight slab; for now stream F-wide (masked stores).
        out = _weighted_sum_2d(feats2d, w)

    return out.reshape(orig_shape)


def make_params(key, n_resolutions, in_features, dtype=jnp.float32):
    # PyTorch init: stdv = 1/sqrt(weight.size(0)) = 1/sqrt(1) = 1.0 -> U(-1, 1)
    keys = jax.random.split(key, n_resolutions)
    ws = [
        jax.random.uniform(k, (1, in_features), dtype=dtype, minval=-1.0, maxval=1.0)
        for k in keys
    ]
    return jnp.stack(ws, axis=0)  # (R, 1, F)


if __name__ == "__main__":
    key = jax.random.PRNGKey(0)

    batch, seq, in_features = 2, 8, 32
    n_resolutions = 3

    k_w, k_f = jax.random.split(key)
    weights = make_params(k_w, n_resolutions, in_features)  # (R, 1, F)

    feat_keys = jax.random.split(k_f, n_resolutions)
    feats_list = [
        jax.random.normal(fk, (batch, seq, in_features), dtype=jnp.float32)
        for fk in feat_keys
    ]

    out = linear_weighted_sum(feats_list, weights)
    jax.block_until_ready(out)

    # Pure-JAX reference (same semantics as the PyTorch module).
    ref = sum(f * w for f, w in zip(feats_list, weights))  # w: (1, F) broadcasts
    assert out.shape == ref.shape
    assert jnp.allclose(out, ref, atol=1e-5, rtol=1e-5), "mismatch vs reference"

    print("KERNEL_OK")
</pallas_src>

<mosaic_0001>
module attributes {stable_mosaic.version = 11 : i64} {
  func.func @_weighted_sum_kernel(%arg0: i32, %arg1: memref<3x1x128xf32, #tpu.memory_space<vmem>>, %arg2: memref<4x128xf32, #tpu.memory_space<vmem>>, %arg3: memref<4x128xf32, #tpu.memory_space<vmem>>, %arg4: memref<4x128xf32, #tpu.memory_space<vmem>>, %arg5: memref<4x128xf32, #tpu.memory_space<vmem>>) attributes {dimension_semantics = [#tpu.dimension_semantics<parallel>], iteration_bounds = array<i64: 1>, scalar_prefetch = 0 : i64, scratch_operands = 0 : i64, tpu.core_type = #tpu.core_type<tc>, window_params = [{pipeline_mode = #tpu.pipeline_mode<synchronous>, transform_indices = @transform_0, window_bounds = array<i64: 3, 1, 128>}, {transform_indices = @transform_1, window_bounds = array<i64: 4, 128>}, {transform_indices = @transform_2, window_bounds = array<i64: 4, 128>}, {transform_indices = @transform_3, window_bounds = array<i64: 4, 128>}, {transform_indices = @transform_4, window_bounds = array<i64: 4, 128>}]} {
    %c0 = arith.constant 0 : index
    %c0_0 = arith.constant 0 : index
    %0 = vector.load %arg2[%c0, %c0_0] : memref<4x128xf32, #tpu.memory_space<vmem>>, vector<4x128xf32>
    %c0_1 = arith.constant 0 : index
    %c0_2 = arith.constant 0 : index
    %c0_3 = arith.constant 0 : index
    %1 = vector.load %arg1[%c0_1, %c0_2, %c0_3] : memref<3x1x128xf32, #tpu.memory_space<vmem>>, vector<1x1x128xf32>
    %2 = vector.shape_cast %1 : vector<1x1x128xf32> to vector<1x128xf32>
    %3 = vector.broadcast %2 : vector<1x128xf32> to vector<4x128xf32>
    %4 = arith.mulf %0, %3 : vector<4x128xf32>
    %c0_4 = arith.constant 0 : index
    %c0_5 = arith.constant 0 : index
    %5 = vector.load %arg3[%c0_4, %c0_5] : memref<4x128xf32, #tpu.memory_space<vmem>>, vector<4x128xf32>
    %c1 = arith.constant 1 : index
    %c0_6 = arith.constant 0 : index
    %c0_7 = arith.constant 0 : index
    %6 = vector.load %arg1[%c1, %c0_6, %c0_7] : memref<3x1x128xf32, #tpu.memory_space<vmem>>, vector<1x1x128xf32>
    %7 = vector.shape_cast %6 : vector<1x1x128xf32> to vector<1x128xf32>
    %8 = vector.broadcast %7 : vector<1x128xf32> to vector<4x128xf32>
    %9 = arith.mulf %5, %8 : vector<4x128xf32>
    %10 = arith.addf %4, %9 : vector<4x128xf32>
    %c0_8 = arith.constant 0 : index
    %c0_9 = arith.constant 0 : index
    %11 = vector.load %arg4[%c0_8, %c0_9] : memref<4x128xf32, #tpu.memory_space<vmem>>, vector<4x128xf32>
    %c2 = arith.constant 2 : index
    %c0_10 = arith.constant 0 : index
    %c0_11 = arith.constant 0 : index
    %12 = vector.load %arg1[%c2, %c0_10, %c0_11] : memref<3x1x128xf32, #tpu.memory_space<vmem>>, vector<1x1x128xf32>
    %13 = vector.shape_cast %12 : vector<1x1x128xf32> to vector<1x128xf32>
    %14 = vector.broadcast %13 : vector<1x128xf32> to vector<4x128xf32>
    %15 = arith.mulf %11, %14 : vector<4x128xf32>
    %16 = arith.addf %10, %15 : vector<4x128xf32>
    %c0_12 = arith.constant 0 : index
    %c0_13 = arith.constant 0 : index
    %17 = vector.load %arg5[%c0_12, %c0_13] : memref<4x128xf32, #tpu.memory_space<vmem>>, vector<4x128xf32>
    tpu.vector_store %arg5[%c0_12, %c0_13], %16 {strides = array<i32>} : memref<4x128xf32, #tpu.memory_space<vmem>>, vector<4x128xf32>,
    return
  }
  func.func @transform_0(%arg0: i32) -> (i32, i32, i32) {
    %c0_i32 = arith.constant 0 : i32
    %c0_i32_0 = arith.constant 0 : i32
    %c0_i32_1 = arith.constant 0 : i32
    %c0_i32_2 = arith.constant 0 : i32
    return %c0_i32, %c0_i32_0, %c0_i32_1 : i32, i32, i32
  }
  func.func @transform_1(%arg0: i32) -> (i32, i32) {
    %c0_i32 = arith.constant 0 : i32
    %c0_i32_0 = arith.constant 0 : i32
    return %arg0, %c0_i32 : i32, i32
  }
  func.func @transform_2(%arg0: i32) -> (i32, i32) {
    %c0_i32 = arith.constant 0 : i32
    %c0_i32_0 = arith.constant 0 : i32
    return %arg0, %c0_i32 : i32, i32
  }
  func.func @transform_3(%arg0: i32) -> (i32, i32) {
    %c0_i32 = arith.constant 0 : i32
    %c0_i32_0 = arith.constant 0 : i32
    return %arg0, %c0_i32 : i32, i32
  }
  func.func @transform_4(%arg0: i32) -> (i32, i32) {
    %c0_i32 = arith.constant 0 : i32
    %c0_i32_0 = arith.constant 0 : i32
    return %arg0, %c0_i32 : i32, i32
  }
}

</mosaic_0001>

<llo_original>
// kernel: linear_weighted_sum.1
$region0: #{linear_weighted_sum.1}
  #allocation0 [shape = 'u32[]', space=smem, size = 0x4, offset = 0x4, fixed_abs, tag = 'smem constant byte address 0x4 - core index']
  #allocation1 [shape = 'u32[72,128]{1,0:T(1,128)}', space=vmem, size = 0x9000, scoped, tag = 'internal scratch']
  %s0 = inlined_call_operand.vmem [shape: f32[3,1,128], index: 0, kind: input, shape index: {}]
  %s1 = inlined_call_operand.vmem [shape: f32[4,128], index: 1, kind: input, shape index: {}]
  %s2 = inlined_call_operand.vmem [shape: f32[4,128], index: 2, kind: input, shape index: {}]
  %s3 = inlined_call_operand.vmem [shape: f32[4,128], index: 3, kind: input, shape index: {}]
  %s4 = inlined_call_operand.vmem [shape: f32[4,128], index: 4, kind: output, shape index: {}]
  %s5 = sld [smem:[#allocation0]]
  $region26: #{linear_weighted_sum.1} parent=0
    _
  %s7 = ssub.s32 1, %s5
  %s8 = scalar_select 0, %s7, %s5
  // Predicated region
  $region2: #{linear_weighted_sum.1} parent=0 // pred_check
    _
  $region3: #{linear_weighted_sum.1} parent=0 // pred_check_branch
    %10 = sbr.rel (0) target = $region5
  $region4: #{linear_weighted_sum.1} parent=0 // pred_region
    _
  $region5: #{linear_weighted_sum.1} parent=0 // pred_fallthru
    _
  // Predicated region
  $region6: #{linear_weighted_sum.1} parent=0 // pred_check
    _
  $region7: #{linear_weighted_sum.1} parent=0 // pred_check_branch
    %12 = sbr.rel (0) target = $region9
  $region8: #{linear_weighted_sum.1} parent=0 // pred_region
    _
  $region9: #{linear_weighted_sum.1} parent=0 // pred_fallthru
    _
  // Predicated region
  $region10: #{linear_weighted_sum.1} parent=0 // pred_check
    _
  $region11: #{linear_weighted_sum.1} parent=0 // pred_check_branch
    %14 = sbr.rel (0) target = $region13
  $region12: #{linear_weighted_sum.1} parent=0 // pred_region
    _
  $region13: #{linear_weighted_sum.1} parent=0 // pred_fallthru
    _
  // Predicated region
  $region14: #{linear_weighted_sum.1} parent=0 // pred_check
    _
  $region15: #{linear_weighted_sum.1} parent=0 // pred_check_branch
    %16 = sbr.rel (0) target = $region17
  $region16: #{linear_weighted_sum.1} parent=0 // pred_region
    _
  $region17: #{linear_weighted_sum.1} parent=0 // pred_fallthru
    _
  %v17 = vld [vmem:[%s1] sm:$0xf]
  %v18 = vld [vmem:[%s0] sm:$0x1]
  %v20 = vperm.slane %v18, 0
  %v22 = vmul.f32 %v17, %v20
  %v23 = vld [vmem:[%s2] sm:$0xf]
  %s24 = scalar_lea.vmem %s0, 1
  %v25 = vld [vmem:[%s24] sm:$0x1]
  %v27 = vperm.slane %v25, 0
  %v29 = vmul.f32 %v23, %v27
  %v30 = vadd.f32 %v22, %v29
  %v31 = vld [vmem:[%s3] sm:$0xf]
  %s32 = scalar_lea.vmem %s0, 2
  %v33 = vld [vmem:[%s32] sm:$0x1]
  %v35 = vperm.slane %v33, 0
  %v37 = vmul.f32 %v31, %v35
  %v38 = vadd.f32 %v30, %v37
  %39 = vst [vmem:[%s4] sm:$0xf] %v38
  // Predicated region
  $region18: #{linear_weighted_sum.1} parent=0 // pred_check
    _
  $region19: #{linear_weighted_sum.1} parent=0 // pred_check_branch
    %41 = sbr.rel (0) target = $region21
  $region20: #{linear_weighted_sum.1} parent=0 // pred_region
    _
  $region21: #{linear_weighted_sum.1} parent=0 // pred_fallthru
    _
  // Predicated region
  $region22: #{linear_weighted_sum.1} parent=0 // pred_check
    _
  $region23: #{linear_weighted_sum.1} parent=0 // pred_check_branch
    %43 = sbr.rel (0) target = $region25
  $region24: #{linear_weighted_sum.1} parent=0 // pred_region
    _
  $region25: #{linear_weighted_sum.1} parent=0 // pred_fallthru
    _

</llo_original>
